<compile_context>
chip_gen: v7x
topology: tpu7x:2x2x1
jax: 0.10.0
libtpu: 0.0.40
codegen_flags: <defaults>
</compile_context>

<pallas_src>
import numpy as np
import jax
import jax.numpy as jnp
from jax.experimental import pallas as pl
from jax.experimental.pallas import tpu as pltpu

_LANES = 128
_MAX_TILE_ROWS = 8192        # 8192 * 128 * 4 B = 4 MiB per buffer
_SPLIT_ROWS = 2048           # split into >= 2 tiles once rows >= 2 * this (v7x 2-TC)

# Fixed weights from the module's __init__ (out_features x in_features).
_W = np.array(
    [[0.3429, 0.0886, 0.4281, -0.009],
     [0.3429, 0.0886, -0.2584, -0.1986],
     [-0.1003, -0.2247, 0.4281, -0.009],
     [-0.1003, -0.2247, -0.2584, -0.1986]], dtype=np.float32)

# The module only pins the weight; nn.Linear's bias keeps PyTorch's random
# default init.
# TODO(synk): PyTorch's random nn.Linear bias init has no deterministic
# equivalent here; a fixed placeholder bias is baked in instead.
_B = np.array([0.01, -0.02, 0.03, -0.04], dtype=np.float32)


def _build_patterns(w, b):
    """(8, 128) table: rows 0..6 = weight pattern for lane shift d = -3..3,
    row 7 = per-lane bias.  Lane l computes output feature l % 4."""
    m = np.arange(_LANES) % 4                      # output feature at each lane
    pats = np.zeros((8, _LANES), np.float32)
    for d in range(-3, 4):
        k = m - d                                  # input feature this shift supplies
        valid = (k >= 0) & (k <= 3)
        pats[d + 3, valid] = w[m[valid], k[valid]]
    pats[7, :] = b[m]
    return jnp.asarray(pats)


_PATTERNS = _build_patterns(_W, _B)


def _linear_flat_kernel(pat_ref, x_ref, o_ref):
    # x_ref / o_ref: (T, 128) lane-flattened row-major [batch, 4] slab.
    # pat_ref: (8, 128) weight/bias patterns (see _build_patterns).
    x = x_ref[...]                                  # one dense wide load
    pat = pat_ref[...]
    acc = x * pat[3:4, :]                           # d = 0 term
    for d in (-3, -2, -1, 1, 2, 3):                 # remaining lane shifts (XLU)
        shifted = pltpu.roll(x, shift=d % _LANES, axis=1)
        acc = acc + shifted * pat[d + 3:d + 4, :]
    o_ref[...] = acc + pat[7:8, :]                  # one dense wide store


def two_blobs_forward(x):
    """y = x @ W.T + b for the fixed TwoBlobsModel weights, via Pallas."""
    x = jnp.asarray(x, jnp.float32)
    batch, in_f = x.shape
    assert in_f == 4, "TwoBlobsModel expects 4 input features"
    out_f = 4

    n = batch * in_f
    flat = x.reshape(-1)                               # free (contiguous view)
    padded = ((n + _LANES - 1) // _LANES) * _LANES
    if padded != n:                                    # only for batch % 32 != 0
        flat = jnp.pad(flat, (0, padded - n))
    rows = padded // _LANES
    x2d = flat.reshape(rows, _LANES)                   # free

    # Tile sizing: large tiles to amortize per-step overhead, capped at 4 MiB
    # per buffer (fits v5e/v6e/v7x scoped VMEM with double buffering); >= 2
    # tiles for medium/large problems so v7x's two TensorCores both get work.
    if rows > _MAX_TILE_ROWS:
        tile_rows = _MAX_TILE_ROWS
    elif rows >= 2 * _SPLIT_ROWS:
        tile_rows = ((rows + 1) // 2 + 7) // 8 * 8
    else:
        tile_rows = rows
    grid_n = pl.cdiv(rows, tile_rows)                  # partial last block OK

    y2d = pl.pallas_call(
        _linear_flat_kernel,
        out_shape=jax.ShapeDtypeStruct((rows, _LANES), jnp.float32),
        grid=(grid_n,),
        in_specs=[
            pl.BlockSpec((8, _LANES), lambda i: (0, 0)),          # patterns
            pl.BlockSpec((tile_rows, _LANES), lambda i: (i, 0)),  # x slab
        ],
        out_specs=pl.BlockSpec((tile_rows, _LANES), lambda i: (i, 0)),
        compiler_params=pltpu.CompilerParams(
            dimension_semantics=("parallel",),
            vmem_limit_bytes=32 * 1024 * 1024,
        ),
    )(_PATTERNS, x2d)

    y_flat = y2d.reshape(-1)                           # free
    if padded != n:
        y_flat = y_flat[:n]                            # drop pad tail only
    return y_flat.reshape(batch, out_f)                # free


if __name__ == "__main__":
    key = jax.random.PRNGKey(0)
    batch = 8
    x = jax.random.normal(key, (batch, 4), dtype=jnp.float32)

    fwd = jax.jit(two_blobs_forward)
    y = fwd(x)
    jax.block_until_ready(y)

    # Reference check in plain JAX (same math as nn.Linear forward).
    y_ref = x @ jnp.asarray(_W).T + jnp.asarray(_B)
    assert y.shape == (batch, 4)
    assert jnp.allclose(y, y_ref, atol=1e-5, rtol=1e-5)

    print("KERNEL_OK")
</pallas_src>

<mosaic_0001>
module attributes {stable_mosaic.version = 11 : i64} {
  func.func @_linear_flat_kernel(%arg0: i32, %arg1: memref<8x128xf32, #tpu.memory_space<vmem>>, %arg2: memref<1x128xf32, #tpu.memory_space<vmem>>, %arg3: memref<1x128xf32, #tpu.memory_space<vmem>>) attributes {dimension_semantics = [#tpu.dimension_semantics<parallel>], iteration_bounds = array<i64: 1>, scalar_prefetch = 0 : i64, scratch_operands = 0 : i64, tpu.core_type = #tpu.core_type<tc>, window_params = [{pipeline_mode = #tpu.pipeline_mode<synchronous>, transform_indices = @transform_0, window_bounds = array<i64: 8, 128>}, {transform_indices = @transform_1, window_bounds = array<i64: 1, 128>}, {transform_indices = @transform_2, window_bounds = array<i64: 1, 128>}]} {
    %c0 = arith.constant 0 : index
    %c0_0 = arith.constant 0 : index
    %0 = vector.load %arg2[%c0, %c0_0] : memref<1x128xf32, #tpu.memory_space<vmem>>, vector<1x128xf32>
    %c0_1 = arith.constant 0 : index
    %c0_2 = arith.constant 0 : index
    %1 = vector.load %arg1[%c0_1, %c0_2] : memref<8x128xf32, #tpu.memory_space<vmem>>, vector<8x128xf32>
    %2 = vector.extract_strided_slice %1 {offsets = [3, 0], sizes = [1, 128], strides = [1, 1]} : vector<8x128xf32> to vector<1x128xf32>
    %3 = arith.mulf %0, %2 : vector<1x128xf32>
    %c125_i32 = arith.constant 125 : i32
    %4 = tpu.dynamic_rotate %0 by %c125_i32 dim 1 : vector<1x128xf32>, i32 -> vector<1x128xf32>
    %5 = vector.extract_strided_slice %1 {offsets = [0, 0], sizes = [1, 128], strides = [1, 1]} : vector<8x128xf32> to vector<1x128xf32>
    %6 = arith.mulf %4, %5 : vector<1x128xf32>
    %7 = arith.addf %3, %6 : vector<1x128xf32>
    %c126_i32 = arith.constant 126 : i32
    %8 = tpu.dynamic_rotate %0 by %c126_i32 dim 1 : vector<1x128xf32>, i32 -> vector<1x128xf32>
    %9 = vector.extract_strided_slice %1 {offsets = [1, 0], sizes = [1, 128], strides = [1, 1]} : vector<8x128xf32> to vector<1x128xf32>
    %10 = arith.mulf %8, %9 : vector<1x128xf32>
    %11 = arith.addf %7, %10 : vector<1x128xf32>
    %c127_i32 = arith.constant 127 : i32
    %12 = tpu.dynamic_rotate %0 by %c127_i32 dim 1 : vector<1x128xf32>, i32 -> vector<1x128xf32>
    %13 = vector.extract_strided_slice %1 {offsets = [2, 0], sizes = [1, 128], strides = [1, 1]} : vector<8x128xf32> to vector<1x128xf32>
    %14 = arith.mulf %12, %13 : vector<1x128xf32>
    %15 = arith.addf %11, %14 : vector<1x128xf32>
    %c1_i32 = arith.constant 1 : i32
    %16 = tpu.dynamic_rotate %0 by %c1_i32 dim 1 : vector<1x128xf32>, i32 -> vector<1x128xf32>
    %17 = vector.extract_strided_slice %1 {offsets = [4, 0], sizes = [1, 128], strides = [1, 1]} : vector<8x128xf32> to vector<1x128xf32>
    %18 = arith.mulf %16, %17 : vector<1x128xf32>
    %19 = arith.addf %15, %18 : vector<1x128xf32>
    %c2_i32 = arith.constant 2 : i32
    %20 = tpu.dynamic_rotate %0 by %c2_i32 dim 1 : vector<1x128xf32>, i32 -> vector<1x128xf32>
    %21 = vector.extract_strided_slice %1 {offsets = [5, 0], sizes = [1, 128], strides = [1, 1]} : vector<8x128xf32> to vector<1x128xf32>
    %22 = arith.mulf %20, %21 : vector<1x128xf32>
    %23 = arith.addf %19, %22 : vector<1x128xf32>
    %c3_i32 = arith.constant 3 : i32
    %24 = tpu.dynamic_rotate %0 by %c3_i32 dim 1 : vector<1x128xf32>, i32 -> vector<1x128xf32>
    %25 = vector.extract_strided_slice %1 {offsets = [6, 0], sizes = [1, 128], strides = [1, 1]} : vector<8x128xf32> to vector<1x128xf32>
    %26 = arith.mulf %24, %25 : vector<1x128xf32>
    %27 = arith.addf %23, %26 : vector<1x128xf32>
    %28 = vector.extract_strided_slice %1 {offsets = [7, 0], sizes = [1, 128], strides = [1, 1]} : vector<8x128xf32> to vector<1x128xf32>
    %29 = arith.addf %27, %28 : vector<1x128xf32>
    %c0_3 = arith.constant 0 : index
    %c0_4 = arith.constant 0 : index
    %30 = vector.load %arg3[%c0_3, %c0_4] : memref<1x128xf32, #tpu.memory_space<vmem>>, vector<1x128xf32>
    tpu.vector_store %arg3[%c0_3, %c0_4], %29 {strides = array<i32>} : memref<1x128xf32, #tpu.memory_space<vmem>>, vector<1x128xf32>,
    return
  }
  func.func @transform_0(%arg0: i32) -> (i32, i32) {
    %c0_i32 = arith.constant 0 : i32
    %c0_i32_0 = arith.constant 0 : i32
    %c0_i32_1 = arith.constant 0 : i32
    return %c0_i32, %c0_i32_0 : i32, i32
  }
  func.func @transform_1(%arg0: i32) -> (i32, i32) {
    %c0_i32 = arith.constant 0 : i32
    %c0_i32_0 = arith.constant 0 : i32
    return %arg0, %c0_i32 : i32, i32
  }
  func.func @transform_2(%arg0: i32) -> (i32, i32) {
    %c0_i32 = arith.constant 0 : i32
    %c0_i32_0 = arith.constant 0 : i32
    return %arg0, %c0_i32 : i32, i32
  }
}

</mosaic_0001>

<llo_original>
// kernel: two_blobs_forward.1
$region0: #{two_blobs_forward.1}
  #allocation0 [shape = 'u32[]', space=smem, size = 0x4, offset = 0x4, fixed_abs, tag = 'smem constant byte address 0x4 - core index']
  #allocation1 [shape = 'u32[144,128]{1,0:T(1,128)}', space=vmem, size = 0x12000, scoped, tag = 'internal scratch']
  %s0 = inlined_call_operand.vmem [shape: f32[8,128], index: 0, kind: input, shape index: {}]
  %s1 = inlined_call_operand.vmem [shape: f32[1,128], index: 1, kind: input, shape index: {}]
  %s2 = inlined_call_operand.vmem [shape: f32[1,128], index: 2, kind: output, shape index: {}]
  %s3 = sld [smem:[#allocation0]]
  $region18: #{two_blobs_forward.1} parent=0
    _
  %s5 = ssub.s32 1, %s3
  %s6 = scalar_select 0, %s5, %s3
  // Predicated region
  $region2: #{two_blobs_forward.1} parent=0 // pred_check
    _
  $region3: #{two_blobs_forward.1} parent=0 // pred_check_branch
    %8 = sbr.rel (0) target = $region5
  $region4: #{two_blobs_forward.1} parent=0 // pred_region
    _
  $region5: #{two_blobs_forward.1} parent=0 // pred_fallthru
    _
  // Predicated region
  $region6: #{two_blobs_forward.1} parent=0 // pred_check
    _
  $region7: #{two_blobs_forward.1} parent=0 // pred_check_branch
    %10 = sbr.rel (0) target = $region9
  $region8: #{two_blobs_forward.1} parent=0 // pred_region
    _
  $region9: #{two_blobs_forward.1} parent=0 // pred_fallthru
    _
  %v11 = vld [vmem:[%s1] sm:$0x1]
  %v12 = vld [vmem:[%s0] sm:$0xff]
  %v15 = vunpack.c.l.s4 1966171168
  %v16 = vunpack.c.0.s8 %v15
  %v17 = vlaneseq
  %v18 = vshrl.u32 %v17, 7
  %v19 = vsub.s32 %v16, %v18
  %v20 = vrot.slane %v12, %v19
  %v21 = vcombine.high %v20, %v20
  %v23 = vunpack.c.l.s4 1966171168
  %v24 = vunpack.c.0.s8 %v23
  %v25 = vlaneseq
  %v26 = vshrl.u32 %v25, 7
  %v27 = vsub.s32 %v24, %v26
  %v28 = vrot.slane %v21, %v27
  %v29 = vcombine.high %v28, %v28
  %v31 = vmul.f32 %v11, %v29
  %32 = vrot.lane.b32.xlu0 %v11, 125
  %v33 = vpop.permute.xlu0 %32
  %v34 = vmul.f32 %v33, %v12
  %v35 = vadd.f32 %v31, %v34
  %36 = vrot.lane.b32.xlu0 %v11, 126
  %v37 = vpop.permute.xlu0 %36
  %v38 = vrot.slane %v12, 1
  %v40 = vmul.f32 %v37, %v38
  %v41 = vadd.f32 %v35, %v40
  %42 = vrot.lane.b32.xlu0 %v11, 127
  %v43 = vpop.permute.xlu0 %42
  %v44 = vrot.slane %v12, 2
  %v46 = vmul.f32 %v43, %v44
  %v47 = vadd.f32 %v41, %v46
  %48 = vrot.lane.b32.xlu0 %v11, 1
  %v49 = vpop.permute.xlu0 %48
  %v50 = vrot.slane %v12, 4
  %v52 = vmul.f32 %v49, %v50
  %v53 = vadd.f32 %v47, %v52
  %54 = vrot.lane.b32.xlu0 %v11, 2
  %v55 = vpop.permute.xlu0 %54
  %v56 = vrot.slane %v12, 5
  %v58 = vmul.f32 %v55, %v56
  %v59 = vadd.f32 %v53, %v58
  %60 = vrot.lane.b32.xlu0 %v11, 3
  %v61 = vpop.permute.xlu0 %60
  %v62 = vrot.slane %v12, 6
  %v64 = vmul.f32 %v61, %v62
  %v65 = vadd.f32 %v59, %v64
  %v66 = vcombine.high %v12, %v12
  %v68 = vunpack.c.l.s4 1966171168
  %v69 = vunpack.c.0.s8 %v68
  %v70 = vlaneseq
  %v71 = vshrl.u32 %v70, 7
  %v72 = vsub.s32 %v69, %v71
  %v73 = vrot.slane %v66, %v72
  %v74 = vcombine.high %v73, %v73
  %v76 = vunpack.c.l.s4 1966171168
  %v77 = vunpack.c.0.s8 %v76
  %v78 = vlaneseq
  %v79 = vshrl.u32 %v78, 7
  %v80 = vsub.s32 %v77, %v79
  %v81 = vrot.slane %v74, %v80
  %v82 = vcombine.high %v81, %v81
  %v84 = vadd.f32 %v65, %v82
  %85 = vst [vmem:[%s2] sm:$0x1] %v84
  // Predicated region
  $region10: #{two_blobs_forward.1} parent=0 // pred_check
    _
  $region11: #{two_blobs_forward.1} parent=0 // pred_check_branch
    %87 = sbr.rel (0) target = $region13
  $region12: #{two_blobs_forward.1} parent=0 // pred_region
    _
  $region13: #{two_blobs_forward.1} parent=0 // pred_fallthru
    _
  // Predicated region
  $region14: #{two_blobs_forward.1} parent=0 // pred_check
    _
  $region15: #{two_blobs_forward.1} parent=0 // pred_check_branch
    %89 = sbr.rel (0) target = $region17
  $region16: #{two_blobs_forward.1} parent=0 // pred_region
    _
  $region17: #{two_blobs_forward.1} parent=0 // pred_fallthru
    _

</llo_original>
